<compile_context>
chip_gen: v5e
topology: v5e:2x2
jax: 0.10.0
libtpu: 0.0.40
codegen_flags: <defaults>
</compile_context>

<pallas_src>
import functools

import jax
import jax.numpy as jnp
from jax.experimental import pallas as pl
from jax.experimental.pallas import tpu as pltpu

_LANES = 128
_NUM_CORES = 2   # leading "parallel" grid axis; uses both TCs on v7x, harmless elsewhere


def _multitask_loss_kernel(cls_pred_ref, cls_tgt_ref, seg_pred_ref, seg_tgt_ref,
                           out_ref, acc_ref, *,
                           n_seg, n_cls, tile_rows, steps_per_core, mask_from):
    core = pl.program_id(0)
    step = pl.program_id(1)
    gstep = core * steps_per_core + step          # logical (unclamped) global block index

    @pl.when(step == 0)
    def _():
        acc_ref[...] = jnp.zeros_like(acc_ref)

    # ---- BCEWithLogits on this (tile_rows, 128) tile: stable formulation ----
    x = seg_pred_ref[...].astype(jnp.float32)
    y = seg_tgt_ref[...].astype(jnp.float32)
    bce = jnp.maximum(x, 0.0) - x * y + jnp.log1p(jnp.exp(-jnp.abs(x)))

    def _tile_reduce(v):
        # (tile_rows, 128) -> (8, 128): vreg-wise sublane-aligned VPU adds.
        return v.reshape(tile_rows // 8, 8, _LANES).sum(axis=0)

    total_steps = _NUM_CORES * steps_per_core     # static Python int
    if mask_from < total_steps:
        # Only the ragged tail block / out-of-range blocks pay for the mask arithmetic.
        @pl.when(gstep < mask_from)
        def _():
            acc_ref[...] += _tile_reduce(bce)

        @pl.when(gstep >= mask_from)
        def _():
            row = jax.lax.broadcasted_iota(jnp.int32, (tile_rows, _LANES), 0)
            lane = jax.lax.broadcasted_iota(jnp.int32, (tile_rows, _LANES), 1)
            gidx = (gstep * tile_rows + row) * _LANES + lane
            # select (not multiply) so undefined/NaN data in partial blocks is dropped safely
            acc_ref[...] += _tile_reduce(jnp.where(gidx < n_seg, bce, 0.0))
    else:
        acc_ref[...] += _tile_reduce(bce)

    last = step == steps_per_core - 1
    lane_o = jax.lax.broadcasted_iota(jnp.int32, (8, _LANES), 1)

    @pl.when(last & (core == 0))
    def _():
        seg_partial = jnp.sum(acc_ref[...]) * (1.0 / float(n_seg))

        # ---- focal loss (gamma=2, alpha=None), mean over batch, on resident (B, C) block ----
        logits = cls_pred_ref[...].astype(jnp.float32)     # (B, C)
        tgt = cls_tgt_ref[...]                             # (B, 1) int32
        B, C = logits.shape
        class_ids = jax.lax.broadcasted_iota(jnp.int32, (B, C), 1)
        one_hot = (class_ids == tgt).astype(jnp.float32)
        m = jnp.max(logits, axis=-1, keepdims=True)
        lse = m + jnp.log(jnp.sum(jnp.exp(logits - m), axis=-1, keepdims=True))
        picked = jnp.sum(one_hot * logits, axis=-1, keepdims=True)
        ce = lse - picked                                   # (B, 1)
        pt = jnp.exp(-ce)
        focal = (1.0 - pt) ** 2 * ce                        # gamma = 2, alpha = None
        cls_loss = jnp.sum(focal) * (1.0 / float(n_cls))

        out_ref[...] = jnp.where(lane_o == 1, cls_loss,
                                 jnp.where(lane_o == 2, seg_partial, 0.0))

    @pl.when(last & (core != 0))
    def _():
        seg_partial = jnp.sum(acc_ref[...]) * (1.0 / float(n_seg))
        out_ref[...] = jnp.where(lane_o == 2, seg_partial, 0.0)


def multitask_loss(cls_pred, seg_pred, cls_target, seg_target, *, max_tile_rows=1024):
    """Returns (total_loss, cls_loss, seg_loss) as scalars.

    seg_pred / seg_target may be any float dtype (bf16 halves HBM traffic); they are
    cast to f32 per-tile inside the kernel.
    """
    cls_target2d = cls_target.astype(jnp.int32).reshape(-1, 1)        # (B, 1)
    B = int(cls_target2d.shape[0])

    n_seg = int(seg_pred.size)
    assert n_seg < 2 ** 31, "int32 element indices would overflow for this seg size"
    rows = -(-n_seg // _LANES)                                        # ceil(n_seg / 128)
    slab_rows = max(rows, 8)                                          # keep >= one (8,128) tile
    pad = slab_rows * _LANES - n_seg                                  # 0 in the common case

    mtr = max(8, (int(max_tile_rows) // 8) * 8)
    tile_rows = max(8, min(mtr, (slab_rows // 8) * 8))                # multiple of 8, <= slab_rows
    num_blocks = -(-slab_rows // tile_rows)
    steps_per_core = -(-num_blocks // _NUM_CORES)

    # Only blocks >= mask_from need the padding/out-of-range mask.
    ragged = (pad != 0) or (slab_rows % tile_rows != 0)
    mask_from = (num_blocks - 1) if ragged else num_blocks

    def to_slab(a):
        flat = a.reshape(-1)
        if pad:  # rare: n_seg % 128 != 0 or tiny input
            flat = jnp.pad(flat, (0, pad))
        return flat.reshape(slab_rows, _LANES)

    seg_pred_slab = to_slab(seg_pred)      # native dtype; cast per-tile in kernel
    seg_tgt_slab = to_slab(seg_target)

    def seg_index_map(c, i):
        # Clamp so out-of-range steps (second core, odd num_blocks) stay in bounds; the
        # kernel's gidx mask zeroes their contribution.
        return (jnp.minimum(c * steps_per_core + i, num_blocks - 1), 0)

    kernel = functools.partial(
        _multitask_loss_kernel, n_seg=n_seg, n_cls=B, tile_rows=tile_rows,
        steps_per_core=steps_per_core, mask_from=mask_from)

    out = pl.pallas_call(
        kernel,
        out_shape=jax.ShapeDtypeStruct((_NUM_CORES * 8, _LANES), jnp.float32),
        grid_spec=pltpu.PrefetchScalarGridSpec(
            num_scalar_prefetch=0,
            grid=(_NUM_CORES, steps_per_core),
            in_specs=[
                pl.BlockSpec(tuple(cls_pred.shape), lambda c, i: (0, 0)),      # resident
                pl.BlockSpec(tuple(cls_target2d.shape), lambda c, i: (0, 0)),  # resident
                pl.BlockSpec((tile_rows, _LANES), seg_index_map),              # tiled seg
                pl.BlockSpec((tile_rows, _LANES), seg_index_map),              # tiled seg
            ],
            out_specs=pl.BlockSpec((8, _LANES), lambda c, i: (c, 0)),          # per-core row block
            scratch_shapes=[pltpu.VMEM((8, _LANES), jnp.float32)],
        ),
        compiler_params=pltpu.CompilerParams(
            dimension_semantics=("parallel", "arbitrary")),
    )(cls_pred, cls_target2d, seg_pred_slab, seg_tgt_slab)

    cls_loss = out[0, 1]
    seg_loss = out[0, 2] + out[8, 2]       # sum the two per-core partial means
    total = cls_loss + seg_loss
    return total, cls_loss, seg_loss


if __name__ == "__main__":
    key = jax.random.PRNGKey(0)
    k1, k2, k3, k4 = jax.random.split(key, 4)

    B, C = 2, 3          # num_classes=3
    H = W = 16

    cls_pred = jax.random.normal(k1, (B, C), dtype=jnp.float32)
    cls_target = jax.random.randint(k2, (B,), 0, C, dtype=jnp.int32)
    seg_pred = jax.random.normal(k3, (B, 1, H, W), dtype=jnp.float32)
    seg_target = (jax.random.uniform(k4, (B, 1, H, W)) > 0.5).astype(jnp.float32)

    total, cls_loss, seg_loss = multitask_loss(cls_pred, seg_pred, cls_target, seg_target)
    jax.block_until_ready((total, cls_loss, seg_loss))

    # sanity check vs. pure-JAX reference
    log_probs = jax.nn.log_softmax(cls_pred, axis=-1)
    ce_ref = -jnp.take_along_axis(log_probs, cls_target[:, None], axis=-1)[:, 0]
    pt_ref = jnp.exp(-ce_ref)
    cls_ref = jnp.mean((1 - pt_ref) ** 2 * ce_ref)
    x, y = seg_pred, seg_target
    seg_ref = jnp.mean(jnp.maximum(x, 0) - x * y + jnp.log1p(jnp.exp(-jnp.abs(x))))
    assert jnp.allclose(cls_loss, cls_ref, atol=1e-5)
    assert jnp.allclose(seg_loss, seg_ref, atol=1e-5)
    assert jnp.allclose(total, cls_ref + seg_ref, atol=1e-5)

    print("KERNEL_OK")
</pallas_src>

<mosaic_0001>
module attributes {stable_mosaic.version = 11 : i64} {
  func.func @_multitask_loss_kernel(%arg0: i32, %arg1: i32, %arg2: memref<2x3xf32, #tpu.memory_space<vmem>>, %arg3: memref<2x1xi32, #tpu.memory_space<vmem>>, %arg4: memref<8x128xf32, #tpu.memory_space<vmem>>, %arg5: memref<8x128xf32, #tpu.memory_space<vmem>>, %arg6: memref<8x128xf32, #tpu.memory_space<vmem>>, %arg7: memref<8x128xf32, #tpu.memory_space<vmem>>) attributes {dimension_semantics = [#tpu.dimension_semantics<parallel>, #tpu.dimension_semantics<arbitrary>], iteration_bounds = array<i64: 2, 1>, scalar_prefetch = 0 : i64, scratch_operands = 1 : i64, tpu.core_type = #tpu.core_type<tc>, window_params = [{pipeline_mode = #tpu.pipeline_mode<synchronous>, transform_indices = @transform_0, window_bounds = array<i64: 2, 3>}, {pipeline_mode = #tpu.pipeline_mode<synchronous>, transform_indices = @transform_1, window_bounds = array<i64: 2, 1>}, {transform_indices = @transform_2, window_bounds = array<i64: 8, 128>}, {transform_indices = @transform_3, window_bounds = array<i64: 8, 128>}, {transform_indices = @transform_4, window_bounds = array<i64: 8, 128>}]} {
    %c1_i32 = arith.constant 1 : i32
    %0 = arith.muli %arg0, %c1_i32 : i32
    %1 = arith.addi %0, %arg1 : i32
    %c0_i32 = arith.constant 0 : i32
    %2 = arith.cmpi eq, %arg1, %c0_i32 : i32
    %3 = arith.extui %2 : i1 to i32
    %c0_i32_0 = arith.constant 0 : i32
    %4 = arith.cmpi ne, %3, %c0_i32_0 : i32
    scf.if %4 {
      %cst_14 = arith.constant 0.000000e+00 : f32
      %33 = vector.broadcast %cst_14 : f32 to vector<8x128xf32>
      %c0_15 = arith.constant 0 : index
      %c0_16 = arith.constant 0 : index
      %34 = vector.load %arg7[%c0_15, %c0_16] : memref<8x128xf32, #tpu.memory_space<vmem>>, vector<8x128xf32>
      tpu.vector_store %arg7[%c0_15, %c0_16], %33 {strides = array<i32>} : memref<8x128xf32, #tpu.memory_space<vmem>>, vector<8x128xf32>,
    } else {
    }
    %c0 = arith.constant 0 : index
    %c0_1 = arith.constant 0 : index
    %5 = vector.load %arg4[%c0, %c0_1] : memref<8x128xf32, #tpu.memory_space<vmem>>, vector<8x128xf32>
    %c0_2 = arith.constant 0 : index
    %c0_3 = arith.constant 0 : index
    %6 = vector.load %arg5[%c0_2, %c0_3] : memref<8x128xf32, #tpu.memory_space<vmem>>, vector<8x128xf32>
    %cst = arith.constant 0.000000e+00 : f32
    %7 = vector.broadcast %cst : f32 to vector<8x128xf32>
    %8 = arith.maximumf %5, %7 : vector<8x128xf32>
    %9 = arith.mulf %5, %6 : vector<8x128xf32>
    %10 = arith.subf %8, %9 : vector<8x128xf32>
    %11 = math.absf %5 : vector<8x128xf32>
    %cst_4 = arith.constant 0.000000e+00 : f32
    %12 = vector.broadcast %cst_4 : f32 to vector<8x128xf32>
    %13 = arith.subf %12, %11 : vector<8x128xf32>
    %14 = math.exp %13 : vector<8x128xf32>
    %15 = math.log1p %14 : vector<8x128xf32>
    %16 = arith.addf %10, %15 : vector<8x128xf32>
    %c0_i32_5 = arith.constant 0 : i32
    %17 = arith.cmpi slt, %1, %c0_i32_5 : i32
    %18 = arith.extui %17 : i1 to i32
    %c0_i32_6 = arith.constant 0 : i32
    %19 = arith.cmpi ne, %18, %c0_i32_6 : i32
    scf.if %19 {
      %c0_14 = arith.constant 0 : index
      %c0_15 = arith.constant 0 : index
      %33 = vector.load %arg7[%c0_14, %c0_15] : memref<8x128xf32, #tpu.memory_space<vmem>>, vector<8x128xf32>
      %34 = vector.shape_cast %16 : vector<8x128xf32> to vector<1x8x128xf32>
      %cst_16 = arith.constant dense<0.000000e+00> : vector<8x128xf32>
      %35 = vector.multi_reduction <add>, %34, %cst_16 [0] : vector<1x8x128xf32> to vector<8x128xf32>
      %36 = arith.addf %33, %35 : vector<8x128xf32>
      %c0_17 = arith.constant 0 : index
      %c0_18 = arith.constant 0 : index
      %37 = vector.load %arg7[%c0_17, %c0_18] : memref<8x128xf32, #tpu.memory_space<vmem>>, vector<8x128xf32>
      tpu.vector_store %arg7[%c0_17, %c0_18], %36 {strides = array<i32>} : memref<8x128xf32, #tpu.memory_space<vmem>>, vector<8x128xf32>,
    } else {
    }
    %c0_i32_7 = arith.constant 0 : i32
    %20 = arith.cmpi sge, %1, %c0_i32_7 : i32
    %21 = arith.extui %20 : i1 to i32
    %c0_i32_8 = arith.constant 0 : i32
    %22 = arith.cmpi ne, %21, %c0_i32_8 : i32
    scf.if %22 {
      %33 = tpu.iota {dimensions = array<i32: 0>} : vector<8x128xi32>
      %34 = tpu.iota {dimensions = array<i32: 1>} : vector<8x128xi32>
      %c8_i32 = arith.constant 8 : i32
      %35 = arith.muli %1, %c8_i32 : i32
      %36 = vector.broadcast %35 : i32 to vector<8x128xi32>
      %37 = arith.addi %36, %33 : vector<8x128xi32>
      %c128_i32 = arith.constant 128 : i32
      %38 = vector.broadcast %c128_i32 : i32 to vector<8x128xi32>
      %39 = arith.muli %37, %38 : vector<8x128xi32>
      %40 = arith.addi %39, %34 : vector<8x128xi32>
      %c0_14 = arith.constant 0 : index
      %c0_15 = arith.constant 0 : index
      %41 = vector.load %arg7[%c0_14, %c0_15] : memref<8x128xf32, #tpu.memory_space<vmem>>, vector<8x128xf32>
      %c512_i32 = arith.constant 512 : i32
      %42 = vector.broadcast %c512_i32 : i32 to vector<8x128xi32>
      %43 = arith.cmpi slt, %40, %42 : vector<8x128xi32>
      %cst_16 = arith.constant 0.000000e+00 : f32
      %44 = vector.broadcast %cst_16 : f32 to vector<8x128xf32>
      %45 = arith.select %43, %16, %44 : vector<8x128xi1>, vector<8x128xf32>
      %46 = vector.shape_cast %45 : vector<8x128xf32> to vector<1x8x128xf32>
      %cst_17 = arith.constant dense<0.000000e+00> : vector<8x128xf32>
      %47 = vector.multi_reduction <add>, %46, %cst_17 [0] : vector<1x8x128xf32> to vector<8x128xf32>
      %48 = arith.addf %41, %47 : vector<8x128xf32>
      %c0_18 = arith.constant 0 : index
      %c0_19 = arith.constant 0 : index
      %49 = vector.load %arg7[%c0_18, %c0_19] : memref<8x128xf32, #tpu.memory_space<vmem>>, vector<8x128xf32>
      tpu.vector_store %arg7[%c0_18, %c0_19], %48 {strides = array<i32>} : memref<8x128xf32, #tpu.memory_space<vmem>>, vector<8x128xf32>,
    } else {
    }
    %c0_i32_9 = arith.constant 0 : i32
    %23 = arith.cmpi eq, %arg1, %c0_i32_9 : i32
    %24 = tpu.iota {dimensions = array<i32: 1>} : vector<8x128xi32>
    %c0_i32_10 = arith.constant 0 : i32
    %25 = arith.cmpi eq, %arg0, %c0_i32_10 : i32
    %26 = arith.andi %23, %25 : i1
    %27 = arith.extui %26 : i1 to i32
    %c0_i32_11 = arith.constant 0 : i32
    %28 = arith.cmpi ne, %27, %c0_i32_11 : i32
    scf.if %28 {
      %c0_14 = arith.constant 0 : index
      %c0_15 = arith.constant 0 : index
      %33 = vector.load %arg7[%c0_14, %c0_15] : memref<8x128xf32, #tpu.memory_space<vmem>>, vector<8x128xf32>
      %34 = vector.shape_cast %33 : vector<8x128xf32> to vector<1x8x128xf32>
      %cst_16 = arith.constant dense<0.000000e+00> : vector<1xf32>
      %35 = vector.multi_reduction <add>, %34, %cst_16 [1, 2] : vector<1x8x128xf32> to vector<1xf32>
      %36 = vector.shape_cast %35 : vector<1xf32> to vector<1x1x1xf32>
      %37 = vector.extract %36[0, 0, 0] : f32 from vector<1x1x1xf32>
      %cst_17 = arith.constant 0.001953125 : f32
      %38 = arith.mulf %37, %cst_17 : f32
      %c0_18 = arith.constant 0 : index
      %c0_19 = arith.constant 0 : index
      %39 = vector.load %arg2[%c0_18, %c0_19] : memref<2x3xf32, #tpu.memory_space<vmem>>, vector<2x3xf32>
      %c0_20 = arith.constant 0 : index
      %c0_21 = arith.constant 0 : index
      %40 = vector.load %arg3[%c0_20, %c0_21] : memref<2x1xi32, #tpu.memory_space<vmem>>, vector<2x1xi32>
      %41 = tpu.iota {dimensions = array<i32: 1>} : vector<2x3xi32>
      %42 = vector.broadcast %40 : vector<2x1xi32> to vector<2x3xi32>
      %43 = arith.cmpi eq, %41, %42 : vector<2x3xi32>
      %44 = arith.extui %43 : vector<2x3xi1> to vector<2x3xi32>
      %45 = arith.sitofp %44 : vector<2x3xi32> to vector<2x3xf32>
      %cst_22 = arith.constant dense<0xFF800000> : vector<2xf32>
      %46 = vector.multi_reduction <maximumf>, %39, %cst_22 [1] : vector<2x3xf32> to vector<2xf32>
      %47 = vector.shape_cast %46 : vector<2xf32> to vector<2x1xf32>
      %48 = vector.broadcast %47 : vector<2x1xf32> to vector<2x3xf32>
      %49 = arith.subf %39, %48 : vector<2x3xf32>
      %50 = math.exp %49 : vector<2x3xf32>
      %cst_23 = arith.constant dense<0.000000e+00> : vector<2xf32>
      %51 = vector.multi_reduction <add>, %50, %cst_23 [1] : vector<2x3xf32> to vector<2xf32>
      %52 = vector.shape_cast %51 : vector<2xf32> to vector<2x1xf32>
      %53 = math.log %52 : vector<2x1xf32>
      %54 = arith.addf %47, %53 : vector<2x1xf32>
      %55 = arith.mulf %45, %39 : vector<2x3xf32>
      %cst_24 = arith.constant dense<0.000000e+00> : vector<2xf32>
      %56 = vector.multi_reduction <add>, %55, %cst_24 [1] : vector<2x3xf32> to vector<2xf32>
      %57 = vector.shape_cast %56 : vector<2xf32> to vector<2x1xf32>
      %58 = arith.subf %54, %57 : vector<2x1xf32>
      %cst_25 = arith.constant 0.000000e+00 : f32
      %59 = vector.broadcast %cst_25 : f32 to vector<2x1xf32>
      %60 = arith.subf %59, %58 : vector<2x1xf32>
      %61 = math.exp %60 : vector<2x1xf32>
      %cst_26 = arith.constant 1.000000e+00 : f32
      %62 = vector.broadcast %cst_26 : f32 to vector<2x1xf32>
      %63 = arith.subf %62, %61 : vector<2x1xf32>
      %64 = arith.mulf %63, %63 : vector<2x1xf32>
      %65 = arith.mulf %64, %58 : vector<2x1xf32>
      %66 = vector.shape_cast %65 : vector<2x1xf32> to vector<1x2x1xf32>
      %cst_27 = arith.constant dense<0.000000e+00> : vector<1xf32>
      %67 = vector.multi_reduction <add>, %66, %cst_27 [1, 2] : vector<1x2x1xf32> to vector<1xf32>
      %68 = vector.shape_cast %67 : vector<1xf32> to vector<1x1x1xf32>
      %69 = vector.extract %68[0, 0, 0] : f32 from vector<1x1x1xf32>
      %cst_28 = arith.constant 5.000000e-01 : f32
      %70 = arith.mulf %69, %cst_28 : f32
      %c1_i32_29 = arith.constant 1 : i32
      %71 = vector.broadcast %c1_i32_29 : i32 to vector<8x128xi32>
      %72 = arith.cmpi eq, %24, %71 : vector<8x128xi32>
      %c2_i32 = arith.constant 2 : i32
      %73 = vector.broadcast %c2_i32 : i32 to vector<8x128xi32>
      %74 = arith.cmpi eq, %24, %73 : vector<8x128xi32>
      %cst_30 = arith.constant 0.000000e+00 : f32
      %75 = vector.broadcast %38 : f32 to vector<8x128xf32>
      %76 = vector.broadcast %cst_30 : f32 to vector<8x128xf32>
      %77 = arith.select %74, %75, %76 : vector<8x128xi1>, vector<8x128xf32>
      %78 = vector.broadcast %70 : f32 to vector<8x128xf32>
      %79 = arith.select %72, %78, %77 : vector<8x128xi1>, vector<8x128xf32>
      %c0_31 = arith.constant 0 : index
      %c0_32 = arith.constant 0 : index
      %80 = vector.load %arg6[%c0_31, %c0_32] : memref<8x128xf32, #tpu.memory_space<vmem>>, vector<8x128xf32>
      tpu.vector_store %arg6[%c0_31, %c0_32], %79 {strides = array<i32>} : memref<8x128xf32, #tpu.memory_space<vmem>>, vector<8x128xf32>,
    } else {
    }
    %c0_i32_12 = arith.constant 0 : i32
    %29 = arith.cmpi ne, %arg0, %c0_i32_12 : i32
    %30 = arith.andi %23, %29 : i1
    %31 = arith.extui %30 : i1 to i32
    %c0_i32_13 = arith.constant 0 : i32
    %32 = arith.cmpi ne, %31, %c0_i32_13 : i32
    scf.if %32 {
      %c0_14 = arith.constant 0 : index
      %c0_15 = arith.constant 0 : index
      %33 = vector.load %arg7[%c0_14, %c0_15] : memref<8x128xf32, #tpu.memory_space<vmem>>, vector<8x128xf32>
      %34 = vector.shape_cast %33 : vector<8x128xf32> to vector<1x8x128xf32>
      %cst_16 = arith.constant dense<0.000000e+00> : vector<1xf32>
      %35 = vector.multi_reduction <add>, %34, %cst_16 [1, 2] : vector<1x8x128xf32> to vector<1xf32>
      %36 = vector.shape_cast %35 : vector<1xf32> to vector<1x1x1xf32>
      %37 = vector.extract %36[0, 0, 0] : f32 from vector<1x1x1xf32>
      %cst_17 = arith.constant 0.001953125 : f32
      %38 = arith.mulf %37, %cst_17 : f32
      %c2_i32 = arith.constant 2 : i32
      %39 = vector.broadcast %c2_i32 : i32 to vector<8x128xi32>
      %40 = arith.cmpi eq, %24, %39 : vector<8x128xi32>
      %cst_18 = arith.constant 0.000000e+00 : f32
      %41 = vector.broadcast %38 : f32 to vector<8x128xf32>
      %42 = vector.broadcast %cst_18 : f32 to vector<8x128xf32>
      %43 = arith.select %40, %41, %42 : vector<8x128xi1>, vector<8x128xf32>
      %c0_19 = arith.constant 0 : index
      %c0_20 = arith.constant 0 : index
      %44 = vector.load %arg6[%c0_19, %c0_20] : memref<8x128xf32, #tpu.memory_space<vmem>>, vector<8x128xf32>
      tpu.vector_store %arg6[%c0_19, %c0_20], %43 {strides = array<i32>} : memref<8x128xf32, #tpu.memory_space<vmem>>, vector<8x128xf32>,
    } else {
    }
    return
  }
  func.func @transform_0(%arg0: i32, %arg1: i32) -> (i32, i32) {
    %c0_i32 = arith.constant 0 : i32
    %c0_i32_0 = arith.constant 0 : i32
    %c0_i32_1 = arith.constant 0 : i32
    return %c0_i32, %c0_i32_0 : i32, i32
  }
  func.func @transform_1(%arg0: i32, %arg1: i32) -> (i32, i32) {
    %c0_i32 = arith.constant 0 : i32
    %c0_i32_0 = arith.constant 0 : i32
    %c0_i32_1 = arith.constant 0 : i32
    return %c0_i32, %c0_i32_0 : i32, i32
  }
  func.func @transform_2(%arg0: i32, %arg1: i32) -> (i32, i32) {
    %c1_i32 = arith.constant 1 : i32
    %0 = arith.muli %arg0, %c1_i32 : i32
    %1 = arith.addi %0, %arg1 : i32
    %c0_i32 = arith.constant 0 : i32
    %2 = arith.minsi %1, %c0_i32 : i32
    %c0_i32_0 = arith.constant 0 : i32
    %c0_i32_1 = arith.constant 0 : i32
    return %2, %c0_i32_0 : i32, i32
  }
  func.func @transform_3(%arg0: i32, %arg1: i32) -> (i32, i32) {
    %c1_i32 = arith.constant 1 : i32
    %0 = arith.muli %arg0, %c1_i32 : i32
    %1 = arith.addi %0, %arg1 : i32
    %c0_i32 = arith.constant 0 : i32
    %2 = arith.minsi %1, %c0_i32 : i32
    %c0_i32_0 = arith.constant 0 : i32
    %c0_i32_1 = arith.constant 0 : i32
    return %2, %c0_i32_0 : i32, i32
  }
  func.func @transform_4(%arg0: i32, %arg1: i32) -> (i32, i32) {
    %c0_i32 = arith.constant 0 : i32
    %c0_i32_0 = arith.constant 0 : i32
    return %arg0, %c0_i32 : i32, i32
  }
}

</mosaic_0001>

<llo_original>
// kernel: tpu_custom_call.1
$region0: #{tpu_custom_call.1}
  #allocation0 [shape = 'u32[]', space=smem, size = 0x4, offset = 0x4, fixed_abs, tag = 'smem constant byte address 0x4 - core index']
  #allocation1 [shape = 'u32[72,128]{1,0:T(1,128)}', space=vmem, size = 0x9000, scoped, tag = 'internal scratch']
  #allocation2 [shape = 'f32[8,128]{1,0:T(8,128)}', space=vmem, size = 0x1000, scoped, tag = 'scratch operand']
  %s0 = inlined_call_operand.vmem [shape: f32[2,3], index: 0, kind: input, shape index: {}]
  %s1 = inlined_call_operand.vmem [shape: s32[2,1], index: 1, kind: input, shape index: {}]
  %s2 = inlined_call_operand.hbm [shape: f32[8,128], index: 2, kind: input, shape index: {}]
  %s3 = inlined_call_operand.hbm [shape: f32[8,128], index: 3, kind: input, shape index: {}]
  %s4 = inlined_call_operand.hbm [shape: f32[16,128], index: 4, kind: output, shape index: {}]
  %s5 = sld [smem:[#allocation0]]
  $region77: #{tpu_custom_call.1} parent=0
    _
  %s7 = ssub.s32 1, %s5
  %s8 = scalar_select 0, %s7, %s5
  $region1: #{tpu_custom_call.1} parent=0
    #allocation3 [shape = 'u8[8192]{0}', space=vmem, size = 0x2000, scoped, tag = 'input window, operand 2']
    #allocation4 [shape = 's32[2]{0}', space=sflag, size = 0x8, scoped, tag = 'scoped memory for tpu_custom_call.1']
    #allocation5 [shape = 's32[2]{0}', space=sflag, size = 0x8, scoped, tag = 'scoped memory for tpu_custom_call.1']
    #allocation6 [shape = 'u8[8192]{0}', space=vmem, size = 0x2000, scoped, tag = 'input window, operand 3']
    #allocation7 [shape = 's32[2]{0}', space=sflag, size = 0x8, scoped, tag = 'scoped memory for tpu_custom_call.1']
    #allocation8 [shape = 'u8[8192]{0}', space=vmem, size = 0x2000, scoped, tag = 'output window, operand 0']
    %9 = vsyncpa [#allocation4], 0
    %s10 = scalar_lea.sflag [#allocation4], 1
    %11 = vsyncpa %s10, 0
    %12 = vsyncpa [#allocation7], 0
    %s13 = scalar_lea.sflag [#allocation7], 1
    %14 = vsyncpa %s13, 0
    %15 = vsyncpa [#allocation5], 0
    %s16 = scalar_lea.sflag [#allocation5], 1
    %17 = vsyncpa %s16, 0
    loop: start=0, step=1, limit=4
    $region2: #{tpu_custom_call.1} parent=1 // loop_pre_header
      _
    $region3: #{tpu_custom_call.1} parent=1 // loop_header
      %s19 = sphi 0, %s23
      %p20 = scmp.ge.s32.totalorder %s19, 4
      %s26 = sphi 0, %s38
      %s27 = sphi 0, %s34
      %s28 = sphi 0, %s26
      %s29 = sphi 0, %s27
      %s30 = sphi 0, %s28
      %s31 = sphi 0, %s29
      %s39 = sphi 0, %s39
      %s41 = sphi 0, %s39
      %s42 = sphi 0, %s41
      %s56 = sphi 0, %s42
      %s60 = sphi 0, %s60
      %s62 = sphi 0, %s60
      %s63 = sphi 0, %s62
      %s77 = sphi 0, %s63
      %s89 = sphi 0, %s91
      %s92 = sphi 0, %s89
      %s93 = sphi 0, %s92
      %s109 = sphi 0, %s93
      %s121 = sphi 0, %s123
      %s124 = sphi 0, %s121
      %s125 = sphi 0, %s124
      %s141 = sphi 0, %s125
      %s147 = sphi 0, %s149
      %s150 = sphi 0, %s147
      %s151 = sphi 0, %s150
      %s167 = sphi 0, %s151
    $region4: #{tpu_custom_call.1} parent=1 // loop_header_branch
      %22 = sbr.rel (%p20) target = $region8
    $region5: #{tpu_custom_call.1} parent=1 // loop_body
      %s24 = ssub.s32 %s19, 1
      %s25 = ssub.s32 %s19, 2
      %s32 = sadd.s32 1, %s27
      %p33 = scmp.ge.s32.totalorder %s32, 1
      %s34 = scalar_select %p33, 0, %s32
      %s35 = sadd.s32 1, %s26
      %s36 = scalar_select %p33, %s35, %s26
      %p37 = scmp.ge.s32.totalorder %s36, 2
      %s38 = scalar_select %p37, 0, %s36
      %s40 = sadd.s32 %s39, 1
      %p43 = scmp.eq.s32.totalorder %s19, 1
      %p44 = scmp.ne.s32.totalorder %s39, %s41
      %p45 = scmp.eq.s32.totalorder %s19, 0
      %p46 = por %p44, %p45
      %p47 = scmp.ne.s32.totalorder %s39, %s41
      %p48 = scmp.eq.s32.totalorder %s24, 1
      %p49 = por %p47, %p48
      %p50 = scmp.ne.s32.totalorder %s41, %s42
      %p51 = scmp.eq.s32.totalorder %s24, 0
      %p52 = por %p50, %p51
      %p53 = scmp.ne.s32.totalorder %s41, %s42
      %p54 = scmp.eq.s32.totalorder %s25, 1
      %p55 = por %p53, %p54
      %p57 = scmp.ne.s32.totalorder %s42, %s56
      %p58 = scmp.eq.s32.totalorder %s25, 0
      %p59 = por %p57, %p58
      %s61 = sadd.s32 %s60, 1
      %p64 = scmp.eq.s32.totalorder %s19, 1
      %p65 = scmp.ne.s32.totalorder %s60, %s62
      %p66 = scmp.eq.s32.totalorder %s19, 0
      %p67 = por %p65, %p66
      %p68 = scmp.ne.s32.totalorder %s60, %s62
      %p69 = scmp.eq.s32.totalorder %s24, 1
      %p70 = por %p68, %p69
      %p71 = scmp.ne.s32.totalorder %s62, %s63
      %p72 = scmp.eq.s32.totalorder %s24, 0
      %p73 = por %p71, %p72
      %p74 = scmp.ne.s32.totalorder %s62, %s63
      %p75 = scmp.eq.s32.totalorder %s25, 1
      %p76 = por %p74, %p75
      %p78 = scmp.ne.s32.totalorder %s63, %s77
      %p79 = scmp.eq.s32.totalorder %s25, 0
      %p80 = por %p78, %p79
      %s81 = sadd.s32 %s26, %s27
      %p82 = scmp.lt.s32.totalorder %s81, 0
      %s83 = scalar_select %p82, %s81, 0
      %s84 = sadd.s32 %s38, %s34
      %p85 = scmp.lt.s32.totalorder %s84, 0
      %s86 = scalar_select %p85, %s84, 0
      %s87 = ssub.s32 %s83, %s86
      %p88 = scmp.eq.s32.totalorder %s87, 0
      %s90 = sadd.s32 %s89, 1
      %s91 = scalar_select %p88, %s89, %s90
      %p94 = pneg %p88
      %p95 = scmp.eq.s32.totalorder %s19, 1
      %p96 = por %p94, %p95
      %p97 = scmp.ne.s32.totalorder %s89, %s92
      %p98 = scmp.eq.s32.totalorder %s19, 0
      %p99 = por %p97, %p98
      %p100 = scmp.ne.s32.totalorder %s89, %s92
      %p101 = scmp.eq.s32.totalorder %s24, 1
      %p102 = por %p100, %p101
      %p103 = scmp.ne.s32.totalorder %s92, %s93
      %p104 = scmp.eq.s32.totalorder %s24, 0
      %p105 = por %p103, %p104
      %p106 = scmp.ne.s32.totalorder %s92, %s93
      %p107 = scmp.eq.s32.totalorder %s25, 1
      %p108 = por %p106, %p107
      %p110 = scmp.ne.s32.totalorder %s93, %s109
      %p111 = scmp.eq.s32.totalorder %s25, 0
      %p112 = por %p110, %p111
      %s113 = sadd.s32 %s26, %s27
      %p114 = scmp.lt.s32.totalorder %s113, 0
      %s115 = scalar_select %p114, %s113, 0
      %s116 = sadd.s32 %s38, %s34
      %p117 = scmp.lt.s32.totalorder %s116, 0
      %s118 = scalar_select %p117, %s116, 0
      %s119 = ssub.s32 %s115, %s118
      %p120 = scmp.eq.s32.totalorder %s119, 0
      %s122 = sadd.s32 %s121, 1
      %s123 = scalar_select %p120, %s121, %s122
      %p126 = pneg %p120
      %p127 = scmp.eq.s32.totalorder %s19, 1
      %p128 = por %p126, %p127
      %p129 = scmp.ne.s32.totalorder %s121, %s124
      %p130 = scmp.eq.s32.totalorder %s19, 0
      %p131 = por %p129, %p130
      %p132 = scmp.ne.s32.totalorder %s121, %s124
      %p133 = scmp.eq.s32.totalorder %s24, 1
      %p134 = por %p132, %p133
      %p135 = scmp.ne.s32.totalorder %s124, %s125
      %p136 = scmp.eq.s32.totalorder %s24, 0
      %p137 = por %p135, %p136
      %p138 = scmp.ne.s32.totalorder %s124, %s125
      %p139 = scmp.eq.s32.totalorder %s25, 1
      %p140 = por %p138, %p139
      %p142 = scmp.ne.s32.totalorder %s125, %s141
      %p143 = scmp.eq.s32.totalorder %s25, 0
      %p144 = por %p142, %p143
      %s145 = ssub.s32 %s26, %s38
      %p146 = scmp.eq.s32.totalorder %s145, 0
      %s148 = sadd.s32 %s147, 1
      %s149 = scalar_select %p146, %s147, %s148
      %p152 = pneg %p146
      %p153 = scmp.eq.s32.totalorder %s19, 1
      %p154 = por %p152, %p153
      %p155 = scmp.ne.s32.totalorder %s147, %s150
      %p156 = scmp.eq.s32.totalorder %s19, 0
      %p157 = por %p155, %p156
      %p158 = scmp.ne.s32.totalorder %s147, %s150
      %p159 = scmp.eq.s32.totalorder %s24, 1
      %p160 = por %p158, %p159
      %p161 = scmp.ne.s32.totalorder %s150, %s151
      %p162 = scmp.eq.s32.totalorder %s24, 0
      %p163 = por %p161, %p162
      %p164 = scmp.ne.s32.totalorder %s150, %s151
      %p165 = scmp.eq.s32.totalorder %s25, 1
      %p166 = por %p164, %p165
      %p168 = scmp.ne.s32.totalorder %s151, %s167
      %p169 = scmp.eq.s32.totalorder %s25, 0
      %p170 = por %p168, %p169
      %p171 = scmp.le.s32.totalorder 1, %s19
      %p172 = scmp.lt.s32.totalorder %s19, 3
      %p173 = pnand %p171, %p172
      %p174 = pneg %p173
      // Predicated region
      $region9: #{tpu_custom_call.1} parent=5 // pred_check
        _
      $region10: #{tpu_custom_call.1} parent=5 // pred_check_branch
        %176 = sbr.rel (%p173) target = $region12
      $region11: #{tpu_custom_call.1} parent=5 // pred_region
        %s177 = ssub.s32 %s19, 1
        // Predicated region
        $region13: #{tpu_custom_call.1} parent=11 // pred_check
          %p178 = pneg %p52
        $region14: #{tpu_custom_call.1} parent=11 // pred_check_branch
          %180 = sbr.rel (%p178) target = $region16
        $region15: #{tpu_custom_call.1} parent=11 // pred_region
          _
        $region16: #{tpu_custom_call.1} parent=11 // pred_fallthru
          _
        // Predicated region
        $region17: #{tpu_custom_call.1} parent=11 // pred_check
          %p181 = pneg %p73
        $region18: #{tpu_custom_call.1} parent=11 // pred_check_branch
          %183 = sbr.rel (%p181) target = $region20
        $region19: #{tpu_custom_call.1} parent=11 // pred_region
          _
        $region20: #{tpu_custom_call.1} parent=11 // pred_fallthru
          _
      $region12: #{tpu_custom_call.1} parent=5 // pred_fallthru
        _
      %p184 = scmp.lt.s32.totalorder %s19, 2
      // Predicated region
      $region21: #{tpu_custom_call.1} parent=5 // pred_check
        %p185 = pneg %p184
      $region22: #{tpu_custom_call.1} parent=5 // pred_check_branch
        %187 = sbr.rel (%p185) target = $region24
      $region23: #{tpu_custom_call.1} parent=5 // pred_region
        // Predicated region
        $region25: #{tpu_custom_call.1} parent=23 // pred_check
          %p188 = pneg %p99
        $region26: #{tpu_custom_call.1} parent=23 // pred_check_branch
          %190 = sbr.rel (%p188) target = $region28
        $region27: #{tpu_custom_call.1} parent=23 // pred_region
          %s191 = sand.u32 %s89, 1
          %s192 = scalar_lea.sflag [#allocation4], %s191
          %s193 = sand.u32 %s89, 1
          %s194 = smul.addr %s193, 8
          %s195 = scalar_lea.vmem [#allocation3], %s194
          %s196 = sadd.s32 %s26, %s27
          %p197 = scmp.lt.s32.totalorder %s196, 0
          %s198 = scalar_select %p197, %s196, 0
          %200 = vsyncadd %s192, 0
          %s201 = smul.addr %s198, 8
          %s202 = scalar_lea.hbm %s2, %s201
          %s204 = sshll.u32 %s202, 4
          %s205 = int_to_ptr.hbm [resolvable:$true] %s204
          %s206 = sshll.u32 %s195, 4
          %s207 = int_to_ptr.vmem [resolvable:$true] %s206
          %209 = dma.hbm_to_vmem [thread:$0]  %s205, 128, %s207, %s192
        $region28: #{tpu_custom_call.1} parent=23 // pred_fallthru
          _
        // Predicated region
        $region29: #{tpu_custom_call.1} parent=23 // pred_check
          %p210 = pneg %p131
        $region30: #{tpu_custom_call.1} parent=23 // pred_check_branch
          %212 = sbr.rel (%p210) target = $region32
        $region31: #{tpu_custom_call.1} parent=23 // pred_region
          %s213 = sand.u32 %s121, 1
          %s214 = scalar_lea.sflag [#allocation7], %s213
          %s215 = sand.u32 %s121, 1
          %s216 = smul.addr %s215, 8
          %s217 = scalar_lea.vmem [#allocation6], %s216
          %s218 = sadd.s32 %s26, %s27
          %p219 = scmp.lt.s32.totalorder %s218, 0
          %s220 = scalar_select %p219, %s218, 0
          %222 = vsyncadd %s214, 0
          %s223 = smul.addr %s220, 8
          %s224 = scalar_lea.hbm %s3, %s223
          %s226 = sshll.u32 %s224, 4
          %s227 = int_to_ptr.hbm [resolvable:$true] %s226
          %s228 = sshll.u32 %s217, 4
          %s229 = int_to_ptr.vmem [resolvable:$true] %s228
          %231 = dma.hbm_to_vmem [thread:$0]  %s227, 128, %s229, %s214
        $region32: #{tpu_custom_call.1} parent=23 // pred_fallthru
          _
      $region24: #{tpu_custom_call.1} parent=5 // pred_fallthru
        _
      %p232 = scmp.le.s32.totalorder 1, %s19
      %p233 = scmp.lt.s32.totalorder %s19, 3
      %p234 = pnand %p232, %p233
      %p235 = pneg %p234
      // Predicated region
      $region33: #{tpu_custom_call.1} parent=5 // pred_check
        _
      $region34: #{tpu_custom_call.1} parent=5 // pred_check_branch
        %237 = sbr.rel (%p234) target = $region36
      $region35: #{tpu_custom_call.1} parent=5 // pred_region
        %s238 = ssub.s32 %s19, 1
        %s239 = sand.u32 %s92, 1
        %s240 = scalar_lea.sflag [#allocation4], %s239
        %s241 = sand.u32 %s92, 1
        %s242 = smul.addr %s241, 8
        %s243 = scalar_lea.vmem [#allocation3], %s242
        // Predicated region
        $region37: #{tpu_custom_call.1} parent=35 // pred_check
          %p244 = pneg %p105
        $region38: #{tpu_custom_call.1} parent=35 // pred_check_branch
          %246 = sbr.rel (%p244) target = $region40
        $region39: #{tpu_custom_call.1} parent=35 // pred_region
          %248 = dma.done %s240, 128
        $region40: #{tpu_custom_call.1} parent=35 // pred_fallthru
          _
        %s249 = sand.u32 %s124, 1
        %s250 = scalar_lea.sflag [#allocation7], %s249
        %s251 = sand.u32 %s124, 1
        %s252 = smul.addr %s251, 8
        %s253 = scalar_lea.vmem [#allocation6], %s252
        // Predicated region
        $region41: #{tpu_custom_call.1} parent=35 // pred_check
          %p254 = pneg %p137
        $region42: #{tpu_custom_call.1} parent=35 // pred_check_branch
          %256 = sbr.rel (%p254) target = $region44
        $region43: #{tpu_custom_call.1} parent=35 // pred_region
          %258 = dma.done %s250, 128
        $region44: #{tpu_custom_call.1} parent=35 // pred_fallthru
          _
        %p259 = pneg %p52
        %p260 = pneg %p49
        %p261 = pneg %p73
        %p262 = pneg %p70
        %s263 = sand.u32 %s92, 1
        %s264 = scalar_lea.sflag [#allocation4], %s263
        %s265 = sand.u32 %s92, 1
        %s266 = smul.addr %s265, 8
        %s267 = scalar_lea.vmem [#allocation3], %s266
        %p268 = pneg %p105
        %p269 = pneg %p102
        %s270 = sand.u32 %s124, 1
        %s271 = scalar_lea.sflag [#allocation7], %s270
        %s272 = sand.u32 %s124, 1
        %s273 = smul.addr %s272, 8
        %s274 = scalar_lea.vmem [#allocation6], %s273
        %p275 = pneg %p137
        %p276 = pneg %p134
        %p277 = pneg %p163
        %p278 = pneg %p160
        %s279 = sand.u32 %s150, 1
        %s280 = scalar_lea.sflag [#allocation5], %s279
        %s281 = sand.u32 %s150, 1
        %s282 = smul.addr %s281, 8
        %s283 = scalar_lea.vmem [#allocation8], %s282
        %s284 = sadd.s32 %s28, %s29
        %p285 = scmp.lt.s32.totalorder %s284, 0
        %s286 = scalar_select %p285, %s284, 0
        %s287 = sadd.s32 %s28, %s29
        %p288 = scmp.lt.s32.totalorder %s287, 0
        %s289 = scalar_select %p288, %s287, 0
        %s290 = sadd.s32 %s28, %s29
        %p291 = scmp.eq.s32.totalorder %s29, 0
        // Predicated region
        $region45: #{tpu_custom_call.1} parent=35 // pred_check
          %p292 = pneg %p291
        $region46: #{tpu_custom_call.1} parent=35 // pred_check_branch
          %294 = sbr.rel (%p292) target = $region48
        $region47: #{tpu_custom_call.1} parent=35 // pred_region
          %295 = vst [vmem:[#allocation2] sm:$0xff] 0.0
        $region48: #{tpu_custom_call.1} parent=35 // pred_fallthru
          _
        %v296 = vld [vmem:[%s243] sm:$0xff]
        %v297 = vld [vmem:[%s253] sm:$0xff]
        %v298 = vmax.f32 %v296, 0.0
        %v299 = vmul.f32 %v296, %v297
        %v300 = vsub.f32 %v298, %v299
        %v301 = vand.u32 2147483647, %v296
        %v302 = vsub.f32 0.0, %v301
        %v303 = vmul.f32 %v302, 1.442695
        %v304 = vpow.pop %v303
        %v305 = vadd.f32 %v304, 1.0
        %v306 = vlog2.pop %v305
        %v307 = vmul.f32 %v306, 0.6931472
        %v308 = vmul.f32 -0.5, %v304
        %v309 = vadd.f32 %v308, 1.0
        %v310 = vmul.f32 %v309, %v304
        %v311 = vand.u32 2147483647, %v304
        %vm312 = vcmp.lt.f32.partialorder %v311, 0.0004427343
        %v313 = vsel %vm312, %v310, %v307
        %v314 = vadd.f32 %v300, %v313
        %p315 = scmp.lt.s32.totalorder %s290, 0
        // Predicated region
        $region49: #{tpu_custom_call.1} parent=35 // pred_check
          %p316 = pneg %p315
        $region50: #{tpu_custom_call.1} parent=35 // pred_check_branch
          %318 = sbr.rel (%p316) target = $region52
        $region51: #{tpu_custom_call.1} parent=35 // pred_region
          %v319 = vld [vmem:[#allocation2] sm:$0xff]
          %v320 = vadd.f32 %v314, 0.0
          %v321 = vadd.f32 %v319, %v320
          %322 = vst [vmem:[#allocation2] sm:$0xff] %v321
        $region52: #{tpu_custom_call.1} parent=35 // pred_fallthru
          _
        %p323 = scmp.ge.s32.totalorder %s290, 0
        // Predicated region
        $region53: #{tpu_custom_call.1} parent=35 // pred_check
          %p324 = pneg %p323
        $region54: #{tpu_custom_call.1} parent=35 // pred_check_branch
          %326 = sbr.rel (%p324) target = $region56
        $region55: #{tpu_custom_call.1} parent=35 // pred_region
          %v327 = vlaneseq
          %v328 = vshrl.u32 %v327, 7
          %v329 = vlaneseq
          %v330 = vand.u32 %v329, 127
          %s331 = smul.u32 %s290, 8
          %v332 = vstv %s331
          %v333 = vadd.s32 %v332, %v328
          %v334 = vmul.u32 %v333, 128
          %v335 = vadd.s32 %v334, %v330
          %v336 = vld [vmem:[#allocation2] sm:$0xff]
          %vm337 = vcmp.lt.s32.totalorder %v335, 512
          %v338 = vsel %vm337, %v314, 0.0
          %v339 = vadd.f32 %v338, 0.0
          %v340 = vadd.f32 %v336, %v339
          %341 = vst [vmem:[#allocation2] sm:$0xff] %v340
        $region56: #{tpu_custom_call.1} parent=35 // pred_fallthru
          _
        %v342 = vlaneseq
        %v343 = vand.u32 %v342, 127
        %p344 = scmp.eq.s32.totalorder %s28, 0
        %p345 = pnand %p291, %p344
        %p346 = pneg %p345
        // Predicated region
        $region57: #{tpu_custom_call.1} parent=35 // pred_check
          _
        $region58: #{tpu_custom_call.1} parent=35 // pred_check_branch
          %348 = sbr.rel (%p345) target = $region60
        $region59: #{tpu_custom_call.1} parent=35 // pred_region
          %v349 = vld [vmem:[#allocation2] sm:$0xff]
          %350 = vadd.xlane.f32.xlu0 %v349
          %v351 = vpop.xlane.xlu0 %350
          %v352 = vrot.slane %v351, 4
          %v353 = vadd.f32 %v351, %v352
          %v354 = vrot.slane %v353, 2
          %v355 = vadd.f32 %v353, %v354
          %v356 = vrot.slane %v355, 1
          %v357 = vadd.f32 %v355, %v356
          %s358 = vtos %v357
          %s359 = smul.f32 %s358, 0.001953125
          %v360 = vld [vmem:[%s0] sm:$0x3]
          %v361 = vld [vmem:[%s1] sm:$0x3]
          %362 = vset.pattern.permute.xlu0 0
          %363 = vperm.xlu0 %362, %v361
          %v364 = vpop.permute.xlu0 %363
          %vm365 = vcmp.eq.s32.totalorder %v343, %v364
          %v366 = vsel %vm365, 1, 0
          %v367 = vcvt.s32.f32 %v366
          %vm368 = vcmask 17408
          %v369 = vsel %vm368, %v360, -inf
          %370 = vmax.xlane.f32.xlu0 %v369
          %v371 = vpop.xlane.xlu0 %370
          %v372 = vsub.f32 %v360, %v371
          %v373 = vmul.f32 %v372, 1.442695
          %v374 = vpow.pop %v373
          %v375 = vsel %vm368, %v374, 0.0
          %376 = vadd.xlane.f32.xlu0 %v375
          %v377 = vpop.xlane.xlu0 %376
          %v378 = vlog2.pop %v377
          %v379 = vmul.f32 %v378, 0.6931472
          %v380 = vadd.f32 %v371, %v379
          %v381 = vmul.f32 %v367, %v360
          %v382 = vsel %vm368, %v381, 0.0
          %383 = vadd.xlane.f32.xlu0 %v382
          %v384 = vpop.xlane.xlu0 %383
          %v385 = vsub.f32 %v380, %v384
          %v386 = vsub.f32 0.0, %v385
          %v387 = vmul.f32 %v386, 1.442695
          %v388 = vpow.pop %v387
          %v389 = vsub.f32 1.0, %v388
          %v390 = vmul.f32 %v389, %v389
          %v391 = vmul.f32 %v390, %v385
          %vm392 = vcmask 1024
          %v393 = vsel %vm392, %v391, 0.0
          %394 = vadd.xlane.f32.xlu0 %v393
          %v395 = vpop.xlane.xlu0 %394
          %v396 = vrot.slane %v395, 4
          %v397 = vadd.f32 %v395, %v396
          %v398 = vrot.slane %v397, 2
          %v399 = vadd.f32 %v397, %v398
          %v400 = vrot.slane %v399, 1
          %v401 = vadd.f32 %v399, %v400
          %s402 = vtos %v401
          %s403 = smul.f32 %s402, 0.5
          %vm404 = vcmp.eq.s32.totalorder %v343, 1
          %vm405 = vcmp.eq.s32.totalorder %v343, 2
          %v406 = vstv %s359
          %v407 = vsel %vm405, %v406, 0.0
          %v408 = vstv %s403
          %v409 = vsel %vm404, %v408, %v407
          %410 = vst [vmem:[%s283] sm:$0xff] %v409
        $region60: #{tpu_custom_call.1} parent=35 // pred_fallthru
          _
        %p411 = scmp.ne.s32.totalorder %s28, 0
        %p412 = pnand %p291, %p411
        %p413 = pneg %p412
        // Predicated region
        $region61: #{tpu_custom_call.1} parent=35 // pred_check
          _
        $region62: #{tpu_custom_call.1} parent=35 // pred_check_branch
          %415 = sbr.rel (%p412) target = $region64
        $region63: #{tpu_custom_call.1} parent=35 // pred_region
          %v416 = vld [vmem:[#allocation2] sm:$0xff]
          %417 = vadd.xlane.f32.xlu0 %v416
          %v418 = vpop.xlane.xlu0 %417
          %v419 = vrot.slane %v418, 4
          %v420 = vadd.f32 %v418, %v419
          %v421 = vrot.slane %v420, 2
          %v422 = vadd.f32 %v420, %v421
          %v423 = vrot.slane %v422, 1
          %v424 = vadd.f32 %v422, %v423
          %s425 = vtos %v424
          %s426 = smul.f32 %s425, 0.001953125
          %vm427 = vcmp.eq.s32.totalorder %v343, 2
          %v428 = vstv %s426
          %v429 = vsel %vm427, %v428, 0.0
          %430 = vst [vmem:[%s283] sm:$0xff] %v429
        $region64: #{tpu_custom_call.1} parent=35 // pred_fallthru
          _
        %s431 = sand.u32 %s150, 1
        %s432 = scalar_lea.sflag [#allocation5], %s431
        %s433 = sand.u32 %s150, 1
        %s434 = smul.addr %s433, 8
        %s435 = scalar_lea.vmem [#allocation8], %s434
        // Predicated region
        $region65: #{tpu_custom_call.1} parent=35 // pred_check
          %p436 = pneg %p160
        $region66: #{tpu_custom_call.1} parent=35 // pred_check_branch
          %438 = sbr.rel (%p436) target = $region68
        $region67: #{tpu_custom_call.1} parent=35 // pred_region
          %440 = vsyncadd %s432, 0
          %s441 = smul.addr %s28, 8
          %s442 = scalar_lea.hbm %s4, %s441
          %s444 = sshll.u32 %s435, 4
          %s445 = int_to_ptr.vmem [resolvable:$true] %s444
          %s446 = sshll.u32 %s442, 4
          %s447 = int_to_ptr.hbm [resolvable:$true] %s446
          %449 = dma.vmem_to_hbm [thread:$0]  %s445, 128, %s447, %s432
        $region68: #{tpu_custom_call.1} parent=35 // pred_fallthru
          _
      $region36: #{tpu_custom_call.1} parent=5 // pred_fallthru
        _
      %p450 = scmp.le.s32.totalorder 2, %s19
      // Predicated region
      $region69: #{tpu_custom_call.1} parent=5 // pred_check
        %p451 = pneg %p450
      $region70: #{tpu_custom_call.1} parent=5 // pred_check_branch
        %453 = sbr.rel (%p451) target = $region72
      $region71: #{tpu_custom_call.1} parent=5 // pred_region
        %s454 = ssub.s32 %s19, 2
        // Predicated region
        $region73: #{tpu_custom_call.1} parent=71 // pred_check
          %p455 = pneg %p166
        $region74: #{tpu_custom_call.1} parent=71 // pred_check_branch
          %457 = sbr.rel (%p455) target = $region76
        $region75: #{tpu_custom_call.1} parent=71 // pred_region
          %s458 = sand.u32 %s151, 1
          %s459 = scalar_lea.sflag [#allocation5], %s458
          %s460 = sand.u32 %s151, 1
          %s461 = smul.addr %s460, 8
          %s462 = scalar_lea.vmem [#allocation8], %s461
          %464 = dma.done %s459, 128
        $region76: #{tpu_custom_call.1} parent=71 // pred_fallthru
          _
      $region72: #{tpu_custom_call.1} parent=5 // pred_fallthru
        _
    $region6: #{tpu_custom_call.1} parent=1 // loop_footer
      %s23 = sadd.s32 1, %s19
    $region7: #{tpu_custom_call.1} parent=1 // loop_footer_branch
      %18 = sbr.rel target = $region3
    $region8: #{tpu_custom_call.1} parent=1 // loop_exit
      _
    %465 = vsyncpa [#allocation4], 1
    %s466 = scalar_lea.sflag [#allocation4], 1
    %467 = vsyncpa %s466, 1
    %468 = vsyncpa [#allocation7], 1
    %s469 = scalar_lea.sflag [#allocation7], 1
    %470 = vsyncpa %s469, 1
    %471 = vsyncpa [#allocation5], 1
    %s472 = scalar_lea.sflag [#allocation5], 1
    %473 = vsyncpa %s472, 1

</llo_original>
